<compile_context>
chip_gen: v7x
topology: tpu7x:2x2x1
jax: 0.10.0
libtpu: 0.0.40
codegen_flags: <defaults>
</compile_context>

<pallas_src>
import jax
import jax.numpy as jnp
from jax.experimental import pallas as pl
from jax.experimental.pallas import tpu as pltpu


_PASS1_TILE_BYTES = 8 << 20   # pass 1 pipelines a single input slab (2 bufs)
_PASS2_TILE_BYTES = 4 << 20   # pass 2 double-buffers input AND output (4x tile)


def _fused_image_budget():
    """Per-image VMEM budget for the fused single-pass path."""
    # ~8 MiB/image keeps 2*(in+out) buffering well inside v7x's 64 MiB VMEM;
    # 128-MiB-VMEM parts (v5e/v6e) can keep larger images resident.
    try:
        if pltpu.get_tpu_info().vmem_capacity_bytes >= (100 << 20):
            return 16 << 20
    except Exception:
        pass
    return 8 << 20


def _choose_thw(hw, c, itemsize, budget_bytes):
    """HW tile: the full extent if it fits ~budget, else the largest multiple
    of 128 that does (cdiv grid + masking handles any remainder)."""
    if c * hw * itemsize <= budget_bytes:
        return hw
    cap = max(128, (budget_bytes // (c * itemsize)) // 128 * 128)
    return min(cap, hw)


# ---------------------------------------------------------------------------
# Fused single-pass kernel: pool + squeeze/excite + scale on a resident block.
# ---------------------------------------------------------------------------
def _fused_kernel(x_ref, w1_ref, b1_ref, w2_ref, b2_ref, o_ref):
    x = x_ref[...]                                                     # (C, HW)
    hw = x.shape[1]
    pooled = jnp.sum(x.astype(jnp.float32), axis=1, keepdims=True) * (1.0 / hw)
    # 1x1 convs on a (C,) vector == tiny matmuls; weights kept in PyTorch
    # (out, in) layout so column vectors flow through with no transposes.
    h = jnp.dot(w1_ref[...], pooled,
                preferred_element_type=jnp.float32) + b1_ref[...]      # (C16, 1)
    h = jnp.where(h > 0, h, 0.1 * h)                                   # LeakyReLU(0.1)
    y = jnp.dot(w2_ref[...], h,
                preferred_element_type=jnp.float32) + b2_ref[...]      # (C, 1)
    y = 1.0 / (1.0 + jnp.exp(-y))                                      # Sigmoid
    # Native-dtype multiply (bf16 stays bf16 on v6e/v7x).
    o_ref[...] = (x * y.astype(x.dtype)).astype(o_ref.dtype)


# ---------------------------------------------------------------------------
# Two-pass fallback for images that do not fit VMEM.
# ---------------------------------------------------------------------------
def _make_pool_attn_kernel(hw_total, thw, ragged):
    """Pass 1: spatial mean + squeeze/excite -> per-channel scale y (C, 1)."""

    def kernel(x_ref, w1_ref, b1_ref, w2_ref, b2_ref, y_ref, acc_ref):
        k = pl.program_id(1)

        @pl.when(k == 0)
        def _():
            acc_ref[...] = jnp.zeros_like(acc_ref)

        xt = x_ref[...].astype(jnp.float32)                            # (C, thw)
        if ragged:
            # cdiv grid: mask lanes past the true H*W in the last tile
            # (padded input values are unspecified).
            lane = jax.lax.broadcasted_iota(jnp.int32, xt.shape, 1) + k * thw
            xt = jnp.where(lane < hw_total, xt, 0.0)
        # Lane reduce per step -- hidden under the HBM DMA at these tile sizes.
        acc_ref[...] += jnp.sum(xt, axis=1, keepdims=True)

        @pl.when(k == pl.num_programs(1) - 1)
        def _():
            pooled = acc_ref[...] * (1.0 / hw_total)                   # true H*W
            h = jnp.dot(w1_ref[...], pooled,
                        preferred_element_type=jnp.float32) + b1_ref[...]
            h = jnp.where(h > 0, h, 0.1 * h)                           # LeakyReLU(0.1)
            y = jnp.dot(w2_ref[...], h,
                        preferred_element_type=jnp.float32) + b2_ref[...]
            y_ref[...] = 1.0 / (1.0 + jnp.exp(-y))                     # Sigmoid

    return kernel


def _scale_kernel(x_ref, y_ref, o_ref):
    """Pass 2: out = x * y (y broadcast along the lane/HW axis)."""
    x = x_ref[...]
    # Native-dtype multiply; y is tiny (C, 1) so the cast is negligible.
    o_ref[...] = (x * y_ref[...].astype(x.dtype)).astype(o_ref.dtype)


# ---------------------------------------------------------------------------
# Wrapper
# ---------------------------------------------------------------------------
def ca_layer(x_nchw, w1, b1, w2, b2, *, thw1=None, thw2=None,
             fused_bytes_limit=None):
    """CALayer.forward.

    x_nchw: (N, C, H, W); w1: (C//16, C); b1: (C//16,); w2: (C, C//16); b2: (C,)
    (PyTorch 1x1-conv weights with the trailing (1, 1) dims squeezed).
    """
    N, C, H, W = x_nchw.shape
    HW = H * W
    C16 = w1.shape[0]
    x = x_nchw.reshape(N, C, HW)          # free view: no transpose, no HBM pass
    itemsize = x.dtype.itemsize
    img_bytes = C * HW * itemsize

    w1f = w1.astype(jnp.float32)
    w2f = w2.astype(jnp.float32)
    b1c = b1.reshape(C16, 1).astype(jnp.float32)
    b2c = b2.reshape(C, 1).astype(jnp.float32)

    if fused_bytes_limit is None:
        fused_bytes_limit = _fused_image_budget()

    # ---- fused single-pass path (2x HBM traffic instead of 3x) ----
    if thw1 is None and thw2 is None and img_bytes <= fused_bytes_limit:
        out = pl.pallas_call(
            _fused_kernel,
            out_shape=jax.ShapeDtypeStruct((N, C, HW), x.dtype),
            grid_spec=pltpu.PrefetchScalarGridSpec(
                num_scalar_prefetch=0,
                grid=(N,),
                in_specs=[
                    pl.BlockSpec((None, C, HW), lambda n: (n, 0, 0)),
                    pl.BlockSpec((C16, C), lambda n: (0, 0)),
                    pl.BlockSpec((C16, 1), lambda n: (0, 0)),
                    pl.BlockSpec((C, C16), lambda n: (0, 0)),
                    pl.BlockSpec((C, 1), lambda n: (0, 0)),
                ],
                out_specs=pl.BlockSpec((None, C, HW), lambda n: (n, 0, 0)),
            ),
            compiler_params=pltpu.CompilerParams(
                # TODO(synk): for N=1 on v7x both TensorCores could be kept
                # busy by splitting HW and exchanging partial pooled sums.
                dimension_semantics=("parallel",),
                vmem_limit_bytes=int(max(4 * img_bytes + (4 << 20), 32 << 20)),
            ),
        )(x, w1f, b1c, w2f, b2c)
        return out.reshape(N, C, H, W)

    # ---- two-pass fallback (large images), decoupled tile sizes ----
    if thw1 is None:
        thw1 = _choose_thw(HW, C, itemsize, _PASS1_TILE_BYTES)
    if thw2 is None:
        thw2 = _choose_thw(HW, C, itemsize, _PASS2_TILE_BYTES)
    assert thw1 == HW or thw1 % 128 == 0, "HW tile must be 128-aligned or full"
    assert thw2 == HW or thw2 % 128 == 0, "HW tile must be 128-aligned or full"
    nk1 = pl.cdiv(HW, thw1)
    nk2 = pl.cdiv(HW, thw2)
    ragged1 = (HW % thw1) != 0

    # Pass 1: per-image channel-attention vector y (N, C, 1), f32.
    y = pl.pallas_call(
        _make_pool_attn_kernel(HW, thw1, ragged1),
        out_shape=jax.ShapeDtypeStruct((N, C, 1), jnp.float32),
        grid_spec=pltpu.PrefetchScalarGridSpec(
            num_scalar_prefetch=0,
            grid=(N, nk1),
            in_specs=[
                pl.BlockSpec((None, C, thw1), lambda n, k: (n, 0, k)),
                pl.BlockSpec((C16, C), lambda n, k: (0, 0)),
                pl.BlockSpec((C16, 1), lambda n, k: (0, 0)),
                pl.BlockSpec((C, C16), lambda n, k: (0, 0)),
                pl.BlockSpec((C, 1), lambda n, k: (0, 0)),
            ],
            out_specs=pl.BlockSpec((None, C, 1), lambda n, k: (n, 0, 0)),
            scratch_shapes=[pltpu.VMEM((C, 1), jnp.float32)],
        ),
        compiler_params=pltpu.CompilerParams(
            dimension_semantics=("parallel", "arbitrary"),
            vmem_limit_bytes=int(max(2 * C * thw1 * itemsize + (4 << 20),
                                     32 << 20)),
        ),
    )(x, w1f, b1c, w2f, b2c)

    # Pass 2: out = x * y, tiled over HW; both grid axes parallel (megacore).
    # TODO(synk): offer input_output_aliases={0: 0} when the caller can donate
    # x, dropping the extra full-tensor output allocation.
    out = pl.pallas_call(
        _scale_kernel,
        out_shape=jax.ShapeDtypeStruct((N, C, HW), x.dtype),
        grid_spec=pltpu.PrefetchScalarGridSpec(
            num_scalar_prefetch=0,
            grid=(N, nk2),
            in_specs=[
                pl.BlockSpec((None, C, thw2), lambda n, k: (n, 0, k)),
                pl.BlockSpec((None, C, 1), lambda n, k: (n, 0, 0)),
            ],
            out_specs=pl.BlockSpec((None, C, thw2), lambda n, k: (n, 0, k)),
        ),
        compiler_params=pltpu.CompilerParams(
            dimension_semantics=("parallel", "parallel"),
            vmem_limit_bytes=int(max(4 * C * thw2 * itemsize + (4 << 20),
                                     32 << 20)),
        ),
    )(x, y)

    return out.reshape(N, C, H, W)


def _reference(x_nchw, w1, b1, w2, b2):
    # Pure-JAX reference of the PyTorch forward (computed in f32).
    pooled = jnp.mean(x_nchw.astype(jnp.float32), axis=(2, 3))          # (N, C)
    h = pooled @ w1.T.astype(jnp.float32) + b1.astype(jnp.float32)
    h = jnp.where(h > 0, h, 0.1 * h)
    y = h @ w2.T.astype(jnp.float32) + b2.astype(jnp.float32)
    y = jax.nn.sigmoid(y)
    return x_nchw.astype(jnp.float32) * y[:, :, None, None]


if __name__ == "__main__":
    # channel must be a multiple of 16 so that channel // 16 >= 1
    N, C, H, W = 2, 32, 16, 16
    C16 = C // 16

    key = jax.random.PRNGKey(0)
    kx, kw1, kb1, kw2, kb2 = jax.random.split(key, 5)

    x = jax.random.normal(kx, (N, C, H, W), dtype=jnp.float32)
    # PyTorch Conv2d(., ., 1) weights with trailing (1, 1) dims squeezed: (out, in).
    w1 = jax.random.normal(kw1, (C16, C), dtype=jnp.float32) * 0.1
    b1 = jax.random.normal(kb1, (C16,), dtype=jnp.float32) * 0.1
    w2 = jax.random.normal(kw2, (C, C16), dtype=jnp.float32) * 0.1
    b2 = jax.random.normal(kb2, (C,), dtype=jnp.float32) * 0.1

    ref = _reference(x, w1, b1, w2, b2)

    # 1) Fused single-pass path (default when the image fits the VMEM budget).
    out = jax.block_until_ready(ca_layer(x, w1, b1, w2, b2))
    assert out.shape == (N, C, H, W)
    assert jnp.allclose(out, ref, atol=1e-5, rtol=1e-5), "fused mismatch vs reference"

    # 2) Two-pass fallback with multi-step pooled accumulation (forced tiles).
    out2 = jax.block_until_ready(
        ca_layer(x, w1, b1, w2, b2, fused_bytes_limit=0, thw1=128, thw2=128))
    assert jnp.allclose(out2, ref, atol=1e-5, rtol=1e-5), "two-pass mismatch vs reference"

    # 3) Ragged H*W (18*18 = 324, not a multiple of 128) through the masked
    #    cdiv-tiled two-pass path.
    H3 = W3 = 18
    x3 = jax.random.normal(kx, (N, C, H3, W3), dtype=jnp.float32)
    ref3 = _reference(x3, w1, b1, w2, b2)
    out3 = jax.block_until_ready(
        ca_layer(x3, w1, b1, w2, b2, fused_bytes_limit=0, thw1=128, thw2=128))
    assert jnp.allclose(out3, ref3, atol=1e-5, rtol=1e-5), "ragged mismatch vs reference"

    # 4) bf16 I/O through the fused path (native bf16 multiply; pooling and the
    #    attention math stay in f32 inside the kernel).
    x_bf16 = x.astype(jnp.bfloat16)
    out_bf16 = jax.block_until_ready(ca_layer(x_bf16, w1, b1, w2, b2))
    ref_bf16 = _reference(x_bf16, w1, b1, w2, b2)
    assert out_bf16.dtype == jnp.bfloat16
    assert jnp.allclose(out_bf16.astype(jnp.float32), ref_bf16,
                        atol=5e-2, rtol=5e-2), "bf16 mismatch vs reference"

    print("KERNEL_OK")
</pallas_src>

<mosaic_0001>
module attributes {stable_mosaic.version = 11 : i64} {
  func.func @_fused_kernel(%arg0: i32, %arg1: memref<1x32x256xf32, #tpu.memory_space<vmem>>, %arg2: memref<2x32xf32, #tpu.memory_space<vmem>>, %arg3: memref<2x1xf32, #tpu.memory_space<vmem>>, %arg4: memref<32x2xf32, #tpu.memory_space<vmem>>, %arg5: memref<32x1xf32, #tpu.memory_space<vmem>>, %arg6: memref<1x32x256xf32, #tpu.memory_space<vmem>>) attributes {dimension_semantics = [#tpu.dimension_semantics<parallel>], iteration_bounds = array<i64: 2>, scalar_prefetch = 0 : i64, scratch_operands = 0 : i64, tpu.core_type = #tpu.core_type<tc>, window_params = [{transform_indices = @transform_0, window_bounds = array<i64: 1, 32, 256>}, {pipeline_mode = #tpu.pipeline_mode<synchronous>, transform_indices = @transform_1, window_bounds = array<i64: 2, 32>}, {pipeline_mode = #tpu.pipeline_mode<synchronous>, transform_indices = @transform_2, window_bounds = array<i64: 2, 1>}, {pipeline_mode = #tpu.pipeline_mode<synchronous>, transform_indices = @transform_3, window_bounds = array<i64: 32, 2>}, {pipeline_mode = #tpu.pipeline_mode<synchronous>, transform_indices = @transform_4, window_bounds = array<i64: 32, 1>}, {transform_indices = @transform_5, window_bounds = array<i64: 1, 32, 256>}]} {
    %c0 = arith.constant 0 : index
    %c0_0 = arith.constant 0 : index
    %c0_1 = arith.constant 0 : index
    %0 = vector.load %arg1[%c0, %c0_0, %c0_1] : memref<1x32x256xf32, #tpu.memory_space<vmem>>, vector<1x32x256xf32>
    %1 = vector.shape_cast %0 : vector<1x32x256xf32> to vector<32x256xf32>
    %cst = arith.constant dense<0.000000e+00> : vector<32xf32>
    %2 = vector.multi_reduction <add>, %1, %cst [1] : vector<32x256xf32> to vector<32xf32>
    %3 = vector.shape_cast %2 : vector<32xf32> to vector<32x1xf32>
    %cst_2 = arith.constant 3.906250e-03 : f32
    %4 = vector.broadcast %cst_2 : f32 to vector<32x1xf32>
    %5 = arith.mulf %3, %4 : vector<32x1xf32>
    %c0_3 = arith.constant 0 : index
    %c0_4 = arith.constant 0 : index
    %6 = vector.load %arg2[%c0_3, %c0_4] : memref<2x32xf32, #tpu.memory_space<vmem>>, vector<2x32xf32>
    %cst_5 = arith.constant dense<0.000000e+00> : vector<2x1xf32>
    %7 = tpu.matmul %6, %5, %cst_5 {dimension_numbers = #tpu.dot_dimension_numbers<[1], [0], [0], [1], [0, 0, 1, 1], [], []>} : vector<2x32xf32>, vector<32x1xf32>, vector<2x1xf32> -> vector<2x1xf32>
    %c0_6 = arith.constant 0 : index
    %c0_7 = arith.constant 0 : index
    %8 = vector.load %arg3[%c0_6, %c0_7] : memref<2x1xf32, #tpu.memory_space<vmem>>, vector<2x1xf32>
    %9 = arith.addf %7, %8 : vector<2x1xf32>
    %cst_8 = arith.constant 0.000000e+00 : f32
    %10 = vector.broadcast %cst_8 : f32 to vector<2x1xf32>
    %11 = arith.cmpf ogt, %9, %10 : vector<2x1xf32>
    %cst_9 = arith.constant 1.000000e-01 : f32
    %12 = vector.broadcast %cst_9 : f32 to vector<2x1xf32>
    %13 = arith.mulf %12, %9 : vector<2x1xf32>
    %14 = arith.select %11, %9, %13 : vector<2x1xi1>, vector<2x1xf32>
    %c0_10 = arith.constant 0 : index
    %c0_11 = arith.constant 0 : index
    %15 = vector.load %arg4[%c0_10, %c0_11] : memref<32x2xf32, #tpu.memory_space<vmem>>, vector<32x2xf32>
    %cst_12 = arith.constant dense<0.000000e+00> : vector<32x1xf32>
    %16 = tpu.matmul %15, %14, %cst_12 {dimension_numbers = #tpu.dot_dimension_numbers<[1], [0], [0], [1], [0, 0, 1, 1], [], []>} : vector<32x2xf32>, vector<2x1xf32>, vector<32x1xf32> -> vector<32x1xf32>
    %c0_13 = arith.constant 0 : index
    %c0_14 = arith.constant 0 : index
    %17 = vector.load %arg5[%c0_13, %c0_14] : memref<32x1xf32, #tpu.memory_space<vmem>>, vector<32x1xf32>
    %18 = arith.addf %16, %17 : vector<32x1xf32>
    %cst_15 = arith.constant 0.000000e+00 : f32
    %19 = vector.broadcast %cst_15 : f32 to vector<32x1xf32>
    %20 = arith.subf %19, %18 : vector<32x1xf32>
    %21 = math.exp %20 : vector<32x1xf32>
    %cst_16 = arith.constant 1.000000e+00 : f32
    %22 = vector.broadcast %cst_16 : f32 to vector<32x1xf32>
    %23 = arith.addf %22, %21 : vector<32x1xf32>
    %cst_17 = arith.constant 1.000000e+00 : f32
    %24 = vector.broadcast %cst_17 : f32 to vector<32x1xf32>
    %25 = arith.divf %24, %23 : vector<32x1xf32>
    %26 = vector.broadcast %25 : vector<32x1xf32> to vector<32x256xf32>
    %27 = arith.mulf %1, %26 : vector<32x256xf32>
    %c0_18 = arith.constant 0 : index
    %c0_19 = arith.constant 0 : index
    %c0_20 = arith.constant 0 : index
    %28 = vector.load %arg6[%c0_18, %c0_19, %c0_20] : memref<1x32x256xf32, #tpu.memory_space<vmem>>, vector<1x32x256xf32>
    %29 = vector.shape_cast %28 : vector<1x32x256xf32> to vector<32x256xf32>
    %30 = vector.shape_cast %27 : vector<32x256xf32> to vector<1x32x256xf32>
    tpu.vector_store %arg6[%c0_18, %c0_19, %c0_20], %30 {strides = array<i32>} : memref<1x32x256xf32, #tpu.memory_space<vmem>>, vector<1x32x256xf32>,
    return
  }
  func.func @transform_0(%arg0: i32) -> (i32, i32, i32) {
    %c0_i32 = arith.constant 0 : i32
    %c0_i32_0 = arith.constant 0 : i32
    %c0_i32_1 = arith.constant 0 : i32
    return %arg0, %c0_i32, %c0_i32_0 : i32, i32, i32
  }
  func.func @transform_1(%arg0: i32) -> (i32, i32) {
    %c0_i32 = arith.constant 0 : i32
    %c0_i32_0 = arith.constant 0 : i32
    %c0_i32_1 = arith.constant 0 : i32
    return %c0_i32, %c0_i32_0 : i32, i32
  }
  func.func @transform_2(%arg0: i32) -> (i32, i32) {
    %c0_i32 = arith.constant 0 : i32
    %c0_i32_0 = arith.constant 0 : i32
    %c0_i32_1 = arith.constant 0 : i32
    return %c0_i32, %c0_i32_0 : i32, i32
  }
  func.func @transform_3(%arg0: i32) -> (i32, i32) {
    %c0_i32 = arith.constant 0 : i32
    %c0_i32_0 = arith.constant 0 : i32
    %c0_i32_1 = arith.constant 0 : i32
    return %c0_i32, %c0_i32_0 : i32, i32
  }
  func.func @transform_4(%arg0: i32) -> (i32, i32) {
    %c0_i32 = arith.constant 0 : i32
    %c0_i32_0 = arith.constant 0 : i32
    %c0_i32_1 = arith.constant 0 : i32
    return %c0_i32, %c0_i32_0 : i32, i32
  }
  func.func @transform_5(%arg0: i32) -> (i32, i32, i32) {
    %c0_i32 = arith.constant 0 : i32
    %c0_i32_0 = arith.constant 0 : i32
    %c0_i32_1 = arith.constant 0 : i32
    return %arg0, %c0_i32, %c0_i32_0 : i32, i32, i32
  }
}

</mosaic_0001>

<llo_original>
// kernel: tpu_custom_call.1
$region0: #{tpu_custom_call.1}
  #allocation0 [shape = 'u32[]', space=smem, size = 0x4, offset = 0x4, fixed_abs, tag = 'smem constant byte address 0x4 - core index']
  #allocation1 [shape = 'u32[144,128]{1,0:T(1,128)}', space=vmem, size = 0x12000, scoped, tag = 'internal scratch']
  %s0 = inlined_call_operand.hbm [shape: f32[2,32,256], index: 0, kind: input, shape index: {}]
  %s1 = inlined_call_operand.vmem [shape: f32[2,32], index: 1, kind: input, shape index: {}]
  %s2 = inlined_call_operand.vmem [shape: f32[2,1], index: 2, kind: input, shape index: {}]
  %s3 = inlined_call_operand.vmem [shape: f32[32,2], index: 3, kind: input, shape index: {}]
  %s4 = inlined_call_operand.vmem [shape: f32[32,1], index: 4, kind: input, shape index: {}]
  %s5 = inlined_call_operand.hbm [shape: f32[2,32,256], index: 5, kind: output, shape index: {}]
  %s6 = sld [smem:[#allocation0]]
  $region57: #{tpu_custom_call.1} parent=0
    _
  %s8 = ssub.s32 1, %s6
  %s9 = scalar_select 0, %s8, %s6
  $region1: #{tpu_custom_call.1} parent=0
    #allocation2 [shape = 'u8[65536]{0}', space=vmem, size = 0x10000, scoped, tag = 'input window, operand 0']
    #allocation3 [shape = 's32[2]{0}', space=sflag, size = 0x8, scoped, tag = 'scoped memory for tpu_custom_call.1']
    #allocation4 [shape = 's32[2]{0}', space=sflag, size = 0x8, scoped, tag = 'scoped memory for tpu_custom_call.1']
    #allocation5 [shape = 'u8[65536]{0}', space=vmem, size = 0x10000, scoped, tag = 'output window, operand 0']
    %10 = vsyncpa [#allocation3], 0
    %s11 = scalar_lea.sflag [#allocation3], 1
    %12 = vsyncpa %s11, 0
    %13 = vsyncpa [#allocation4], 0
    %s14 = scalar_lea.sflag [#allocation4], 1
    %15 = vsyncpa %s14, 0
    loop: start=0, step=1, limit=4
    $region2: #{tpu_custom_call.1} parent=1 // loop_pre_header
      _
    $region3: #{tpu_custom_call.1} parent=1 // loop_header
      %s17 = sphi 0, %s21
      %p18 = scmp.ge.s32.totalorder %s17, 4
      %s27 = sphi 0, %s29
      %s30 = sphi 0, %s27
      %s31 = sphi 0, %s30
      %s47 = sphi 0, %s31
      %s51 = sphi 0, %s51
      %s53 = sphi 0, %s51
      %s54 = sphi 0, %s53
      %s68 = sphi 0, %s54
      %s72 = sphi 0, %s72
      %s74 = sphi 0, %s72
      %s75 = sphi 0, %s74
      %s89 = sphi 0, %s75
      %s93 = sphi 0, %s93
      %s95 = sphi 0, %s93
      %s96 = sphi 0, %s95
      %s110 = sphi 0, %s96
      %s114 = sphi 0, %s114
      %s116 = sphi 0, %s114
      %s117 = sphi 0, %s116
      %s131 = sphi 0, %s117
      %s137 = sphi 0, %s139
      %s140 = sphi 0, %s137
      %s141 = sphi 0, %s140
      %s157 = sphi 0, %s141
    $region4: #{tpu_custom_call.1} parent=1 // loop_header_branch
      %20 = sbr.rel (%p18) target = $region8
    $region5: #{tpu_custom_call.1} parent=1 // loop_body
      %s22 = ssub.s32 %s17, 1
      %s23 = ssub.s32 %s17, 2
      %s24 = sadd.s32 %s17, 1
      %s25 = ssub.s32 %s17, %s24
      %p26 = scmp.eq.s32.totalorder %s25, 0
      %s28 = sadd.s32 %s27, 1
      %s29 = scalar_select %p26, %s27, %s28
      %p32 = pneg %p26
      %p33 = scmp.eq.s32.totalorder %s17, 1
      %p34 = por %p32, %p33
      %p35 = scmp.ne.s32.totalorder %s27, %s30
      %p36 = scmp.eq.s32.totalorder %s17, 0
      %p37 = por %p35, %p36
      %p38 = scmp.ne.s32.totalorder %s27, %s30
      %p39 = scmp.eq.s32.totalorder %s22, 1
      %p40 = por %p38, %p39
      %p41 = scmp.ne.s32.totalorder %s30, %s31
      %p42 = scmp.eq.s32.totalorder %s22, 0
      %p43 = por %p41, %p42
      %p44 = scmp.ne.s32.totalorder %s30, %s31
      %p45 = scmp.eq.s32.totalorder %s23, 1
      %p46 = por %p44, %p45
      %p48 = scmp.ne.s32.totalorder %s31, %s47
      %p49 = scmp.eq.s32.totalorder %s23, 0
      %p50 = por %p48, %p49
      %s52 = sadd.s32 %s51, 1
      %p55 = scmp.eq.s32.totalorder %s17, 1
      %p56 = scmp.ne.s32.totalorder %s51, %s53
      %p57 = scmp.eq.s32.totalorder %s17, 0
      %p58 = por %p56, %p57
      %p59 = scmp.ne.s32.totalorder %s51, %s53
      %p60 = scmp.eq.s32.totalorder %s22, 1
      %p61 = por %p59, %p60
      %p62 = scmp.ne.s32.totalorder %s53, %s54
      %p63 = scmp.eq.s32.totalorder %s22, 0
      %p64 = por %p62, %p63
      %p65 = scmp.ne.s32.totalorder %s53, %s54
      %p66 = scmp.eq.s32.totalorder %s23, 1
      %p67 = por %p65, %p66
      %p69 = scmp.ne.s32.totalorder %s54, %s68
      %p70 = scmp.eq.s32.totalorder %s23, 0
      %p71 = por %p69, %p70
      %s73 = sadd.s32 %s72, 1
      %p76 = scmp.eq.s32.totalorder %s17, 1
      %p77 = scmp.ne.s32.totalorder %s72, %s74
      %p78 = scmp.eq.s32.totalorder %s17, 0
      %p79 = por %p77, %p78
      %p80 = scmp.ne.s32.totalorder %s72, %s74
      %p81 = scmp.eq.s32.totalorder %s22, 1
      %p82 = por %p80, %p81
      %p83 = scmp.ne.s32.totalorder %s74, %s75
      %p84 = scmp.eq.s32.totalorder %s22, 0
      %p85 = por %p83, %p84
      %p86 = scmp.ne.s32.totalorder %s74, %s75
      %p87 = scmp.eq.s32.totalorder %s23, 1
      %p88 = por %p86, %p87
      %p90 = scmp.ne.s32.totalorder %s75, %s89
      %p91 = scmp.eq.s32.totalorder %s23, 0
      %p92 = por %p90, %p91
      %s94 = sadd.s32 %s93, 1
      %p97 = scmp.eq.s32.totalorder %s17, 1
      %p98 = scmp.ne.s32.totalorder %s93, %s95
      %p99 = scmp.eq.s32.totalorder %s17, 0
      %p100 = por %p98, %p99
      %p101 = scmp.ne.s32.totalorder %s93, %s95
      %p102 = scmp.eq.s32.totalorder %s22, 1
      %p103 = por %p101, %p102
      %p104 = scmp.ne.s32.totalorder %s95, %s96
      %p105 = scmp.eq.s32.totalorder %s22, 0
      %p106 = por %p104, %p105
      %p107 = scmp.ne.s32.totalorder %s95, %s96
      %p108 = scmp.eq.s32.totalorder %s23, 1
      %p109 = por %p107, %p108
      %p111 = scmp.ne.s32.totalorder %s96, %s110
      %p112 = scmp.eq.s32.totalorder %s23, 0
      %p113 = por %p111, %p112
      %s115 = sadd.s32 %s114, 1
      %p118 = scmp.eq.s32.totalorder %s17, 1
      %p119 = scmp.ne.s32.totalorder %s114, %s116
      %p120 = scmp.eq.s32.totalorder %s17, 0
      %p121 = por %p119, %p120
      %p122 = scmp.ne.s32.totalorder %s114, %s116
      %p123 = scmp.eq.s32.totalorder %s22, 1
      %p124 = por %p122, %p123
      %p125 = scmp.ne.s32.totalorder %s116, %s117
      %p126 = scmp.eq.s32.totalorder %s22, 0
      %p127 = por %p125, %p126
      %p128 = scmp.ne.s32.totalorder %s116, %s117
      %p129 = scmp.eq.s32.totalorder %s23, 1
      %p130 = por %p128, %p129
      %p132 = scmp.ne.s32.totalorder %s117, %s131
      %p133 = scmp.eq.s32.totalorder %s23, 0
      %p134 = por %p132, %p133
      %s135 = ssub.s32 %s17, %s24
      %p136 = scmp.eq.s32.totalorder %s135, 0
      %s138 = sadd.s32 %s137, 1
      %s139 = scalar_select %p136, %s137, %s138
      %p142 = pneg %p136
      %p143 = scmp.eq.s32.totalorder %s17, 1
      %p144 = por %p142, %p143
      %p145 = scmp.ne.s32.totalorder %s137, %s140
      %p146 = scmp.eq.s32.totalorder %s17, 0
      %p147 = por %p145, %p146
      %p148 = scmp.ne.s32.totalorder %s137, %s140
      %p149 = scmp.eq.s32.totalorder %s22, 1
      %p150 = por %p148, %p149
      %p151 = scmp.ne.s32.totalorder %s140, %s141
      %p152 = scmp.eq.s32.totalorder %s22, 0
      %p153 = por %p151, %p152
      %p154 = scmp.ne.s32.totalorder %s140, %s141
      %p155 = scmp.eq.s32.totalorder %s23, 1
      %p156 = por %p154, %p155
      %p158 = scmp.ne.s32.totalorder %s141, %s157
      %p159 = scmp.eq.s32.totalorder %s23, 0
      %p160 = por %p158, %p159
      %p161 = scmp.le.s32.totalorder 1, %s17
      %p162 = scmp.lt.s32.totalorder %s17, 3
      %p163 = pnand %p161, %p162
      %p164 = pneg %p163
      // Predicated region
      $region9: #{tpu_custom_call.1} parent=5 // pred_check
        _
      $region10: #{tpu_custom_call.1} parent=5 // pred_check_branch
        %166 = sbr.rel (%p163) target = $region12
      $region11: #{tpu_custom_call.1} parent=5 // pred_region
        %s167 = ssub.s32 %s17, 1
        // Predicated region
        $region13: #{tpu_custom_call.1} parent=11 // pred_check
          %p168 = pneg %p64
        $region14: #{tpu_custom_call.1} parent=11 // pred_check_branch
          %170 = sbr.rel (%p168) target = $region16
        $region15: #{tpu_custom_call.1} parent=11 // pred_region
          _
        $region16: #{tpu_custom_call.1} parent=11 // pred_fallthru
          _
        // Predicated region
        $region17: #{tpu_custom_call.1} parent=11 // pred_check
          %p171 = pneg %p85
        $region18: #{tpu_custom_call.1} parent=11 // pred_check_branch
          %173 = sbr.rel (%p171) target = $region20
        $region19: #{tpu_custom_call.1} parent=11 // pred_region
          _
        $region20: #{tpu_custom_call.1} parent=11 // pred_fallthru
          _
        // Predicated region
        $region21: #{tpu_custom_call.1} parent=11 // pred_check
          %p174 = pneg %p106
        $region22: #{tpu_custom_call.1} parent=11 // pred_check_branch
          %176 = sbr.rel (%p174) target = $region24
        $region23: #{tpu_custom_call.1} parent=11 // pred_region
          _
        $region24: #{tpu_custom_call.1} parent=11 // pred_fallthru
          _
        // Predicated region
        $region25: #{tpu_custom_call.1} parent=11 // pred_check
          %p177 = pneg %p127
        $region26: #{tpu_custom_call.1} parent=11 // pred_check_branch
          %179 = sbr.rel (%p177) target = $region28
        $region27: #{tpu_custom_call.1} parent=11 // pred_region
          _
        $region28: #{tpu_custom_call.1} parent=11 // pred_fallthru
          _
      $region12: #{tpu_custom_call.1} parent=5 // pred_fallthru
        _
      %p180 = scmp.lt.s32.totalorder %s17, 2
      // Predicated region
      $region29: #{tpu_custom_call.1} parent=5 // pred_check
        %p181 = pneg %p180
      $region30: #{tpu_custom_call.1} parent=5 // pred_check_branch
        %183 = sbr.rel (%p181) target = $region32
      $region31: #{tpu_custom_call.1} parent=5 // pred_region
        // Predicated region
        $region33: #{tpu_custom_call.1} parent=31 // pred_check
          %p184 = pneg %p37
        $region34: #{tpu_custom_call.1} parent=31 // pred_check_branch
          %186 = sbr.rel (%p184) target = $region36
        $region35: #{tpu_custom_call.1} parent=31 // pred_region
          %s187 = sand.u32 %s27, 1
          %s188 = scalar_lea.sflag [#allocation3], %s187
          %s189 = sand.u32 %s27, 1
          %s190 = smul.addr %s189, 64
          %s191 = scalar_lea.vmem [#allocation2], %s190
          %s193 = ssub.s32 1024, 1024
          %194 = vsyncadd %s188, %s193
          %s195 = smul.addr %s17, 8
          %s196 = smul.addr %s195, 128
          %s197 = scalar_lea.hbm %s0, %s196
          %s198 = sshll.u32 %s191, 4
          %s199 = int_to_ptr.vmem [resolvable:$true] %s198
          %204 = dma.hbm_to_vmem [thread:$0]  %s197, 1024, %s199, %s188, 256, 256, 16
        $region36: #{tpu_custom_call.1} parent=31 // pred_fallthru
          _
      $region32: #{tpu_custom_call.1} parent=5 // pred_fallthru
        _
      %p205 = scmp.le.s32.totalorder 1, %s17
      %p206 = scmp.lt.s32.totalorder %s17, 3
      %p207 = pnand %p205, %p206
      %p208 = pneg %p207
      // Predicated region
      $region37: #{tpu_custom_call.1} parent=5 // pred_check
        _
      $region38: #{tpu_custom_call.1} parent=5 // pred_check_branch
        %210 = sbr.rel (%p207) target = $region40
      $region39: #{tpu_custom_call.1} parent=5 // pred_region
        %s211 = ssub.s32 %s17, 1
        %s212 = sand.u32 %s30, 1
        %s213 = scalar_lea.sflag [#allocation3], %s212
        %s214 = sand.u32 %s30, 1
        %s215 = smul.addr %s214, 64
        %s216 = scalar_lea.vmem [#allocation2], %s215
        // Predicated region
        $region41: #{tpu_custom_call.1} parent=39 // pred_check
          %p217 = pneg %p43
        $region42: #{tpu_custom_call.1} parent=39 // pred_check_branch
          %219 = sbr.rel (%p217) target = $region44
        $region43: #{tpu_custom_call.1} parent=39 // pred_region
          %220 = dma.done %s213, 1024
        $region44: #{tpu_custom_call.1} parent=39 // pred_fallthru
          _
        %s221 = sand.u32 %s30, 1
        %s222 = scalar_lea.sflag [#allocation3], %s221
        %s223 = sand.u32 %s30, 1
        %s224 = smul.addr %s223, 64
        %s225 = scalar_lea.vmem [#allocation2], %s224
        %p226 = pneg %p43
        %p227 = pneg %p40
        %p228 = pneg %p64
        %p229 = pneg %p61
        %p230 = pneg %p85
        %p231 = pneg %p82
        %p232 = pneg %p106
        %p233 = pneg %p103
        %p234 = pneg %p127
        %p235 = pneg %p124
        %p236 = pneg %p153
        %p237 = pneg %p150
        %s238 = sand.u32 %s140, 1
        %s239 = scalar_lea.sflag [#allocation4], %s238
        %s240 = sand.u32 %s140, 1
        %s241 = smul.addr %s240, 64
        %s242 = scalar_lea.vmem [#allocation5], %s241
        %v243 = vld [vmem:[%s216] sm:$0xff]
        %v244 = vld [vmem:[%s216 + $0x8] sm:$0xff]
        %v245 = vld [vmem:[%s216 + $0x10] sm:$0xff]
        %v246 = vld [vmem:[%s216 + $0x18] sm:$0xff]
        %v247 = vld [vmem:[%s216 + $0x20] sm:$0xff]
        %v248 = vld [vmem:[%s216 + $0x28] sm:$0xff]
        %v249 = vld [vmem:[%s216 + $0x30] sm:$0xff]
        %v250 = vld [vmem:[%s216 + $0x38] sm:$0xff]
        %v251 = vadd.f32 %v243, %v244
        %252 = vadd.xlane.f32.xlu0 %v251
        %v253 = vpop.xlane.xlu0 %252
        %v254 = vadd.f32 %v245, %v246
        %255 = vadd.xlane.f32.xlu0 %v254
        %v256 = vpop.xlane.xlu0 %255
        %v257 = vadd.f32 %v247, %v248
        %258 = vadd.xlane.f32.xlu0 %v257
        %v259 = vpop.xlane.xlu0 %258
        %v260 = vadd.f32 %v249, %v250
        %261 = vadd.xlane.f32.xlu0 %v260
        %v262 = vpop.xlane.xlu0 %261
        %v263 = vmul.f32 %v253, 0.00390625
        %v264 = vmul.f32 %v256, 0.00390625
        %v265 = vmul.f32 %v259, 0.00390625
        %v266 = vmul.f32 %v262, 0.00390625
        %v267 = vld [vmem:[%s1] sm:$0x3]
        %v268 = vld [vmem:[%s2] sm:$0x3]
        %vm269 = vcmask 261120
        %v271 = vsel %vm269, %v267, 0
        %273 = vmatprep.subr.mxu0 0.0
        %274 = vmatpush1.msra.mxu0 %v263
        %275 = vmatprep.subr.mxu0 0.0
        %276 = vmatpush1.msra.mxu0 %v264
        %277 = vmatprep.subr.mxu0 0.0
        %278 = vmatpush1.msra.mxu0 %v265
        %279 = vmatprep.subr.mxu0 0.0
        %280 = vmatpush1.msra.mxu0 %v266
        %281 = vmatprep.subr.mxu0 0.0
        %282 = vmatpush1.msra.mxu0 0.0
        %283 = vmatprep.subr.mxu0 0.0
        %284 = vmatpush1.msra.mxu0 0.0
        %285 = vmatprep.subr.mxu0 0.0
        %286 = vmatpush1.msra.mxu0 0.0
        %287 = vmatprep.subr.mxu0 0.0
        %288 = vmatpush1.msra.mxu0 0.0
        %289 = vmatprep.subr.mxu0 0.0
        %290 = vmatpush1.msra.mxu0 0.0
        %291 = vmatprep.subr.mxu0 0.0
        %292 = vmatpush1.msra.mxu0 0.0
        %293 = vmatprep.subr.mxu0 0.0
        %294 = vmatpush1.msra.mxu0 0.0
        %295 = vmatprep.subr.mxu0 0.0
        %296 = vmatpush1.msra.mxu0 0.0
        %297 = vmatprep.subr.mxu0 0.0
        %298 = vmatpush1.msra.mxu0 0.0
        %299 = vmatprep.subr.mxu0 0.0
        %300 = vmatpush1.msra.mxu0 0.0
        %301 = vmatprep.subr.mxu0 0.0
        %302 = vmatpush1.msra.mxu0 0.0
        %303 = vmatprep.subr.mxu0 0.0
        %304 = vmatpush1.msra.mxu0 0.0
        %305 = vmatprep.subr.mxu0 0.0
        %306 = vmatpush1.msra.mxu0 0.0
        %307 = vmatprep.subr.mxu0 0.0
        %308 = vmatpush1.msra.mxu0 0.0
        %309 = vmatprep.subr.mxu0 0.0
        %310 = vmatpush1.msra.mxu0 0.0
        %311 = vmatprep.subr.mxu0 0.0
        %312 = vmatpush1.msra.mxu0 0.0
        %313 = vmatprep.subr.mxu0 0.0
        %314 = vmatpush1.msra.mxu0 0.0
        %315 = vmatprep.subr.mxu0 0.0
        %316 = vmatpush1.msra.mxu0 0.0
        %317 = vmatprep.subr.mxu0 0.0
        %318 = vmatpush1.msra.mxu0 0.0
        %319 = vmatprep.subr.mxu0 0.0
        %320 = vmatpush1.msra.mxu0 0.0
        %321 = vmatprep.subr.mxu0 0.0
        %322 = vmatpush1.msra.mxu0 0.0
        %323 = vmatprep.subr.mxu0 0.0
        %324 = vmatpush1.msra.mxu0 0.0
        %325 = vmatprep.subr.mxu0 0.0
        %326 = vmatpush1.msra.mxu0 0.0
        %327 = vmatprep.subr.mxu0 0.0
        %328 = vmatpush1.msra.mxu0 0.0
        %329 = vmatprep.subr.mxu0 0.0
        %330 = vmatpush1.msra.mxu0 0.0
        %331 = vmatprep.subr.mxu0 0.0
        %332 = vmatpush1.msra.mxu0 0.0
        %333 = vmatprep.subr.mxu0 0.0
        %334 = vmatpush1.msra.mxu0 0.0
        %335 = vmatprep.subr.mxu0 0.0
        %336 = vmatpush1.msra.mxu0 0.0
        %337 = vmatprep.mubr.f32.mxu0 0.0
        %338 = vmatmul.mubr.f32.gmra.mrb[0].mxu0 %v271
        %v339 = vpop.f32.mrb[0].mxu0
        %v340 = vadd.f32 %v268, %v339
        %v341 = vpop.f32.mrb[0].mxu0
        %342 = vdwg.mxu0
        %vm343 = vcmp.gt.f32.partialorder %v340, 0.0
        %v344 = vmul.f32 %v340, 0.1
        %v345 = vsel %vm343, %v340, %v344
        %v346 = vld [vmem:[%s3] sm:$0xff]
        %v347 = vld [vmem:[%s3 + $0x8] sm:$0xff]
        %v348 = vld [vmem:[%s3 + $0x10] sm:$0xff]
        %v349 = vld [vmem:[%s3 + $0x18] sm:$0xff]
        %v350 = vld [vmem:[%s4] sm:$0xff]
        %v351 = vld [vmem:[%s4 + $0x8] sm:$0xff]
        %v352 = vld [vmem:[%s4 + $0x10] sm:$0xff]
        %v353 = vld [vmem:[%s4 + $0x18] sm:$0xff]
        %vm354 = vcmask 15360
        %v356 = vsel %vm354, %v346, 0
        %v359 = vsel %vm354, %v347, 0
        %v362 = vsel %vm354, %v348, 0
        %v365 = vsel %vm354, %v349, 0
        %vm367 = vcmask 1041408
        %v369 = vsel %vm367, %v345, 0
        %371 = vmatprep.subr.mxu0 0.0
        %372 = vmatpush1.msra.mxu0 %v369
        %373 = vmatprep.subr.mxu0 0.0
        %374 = vmatpush1.msra.mxu0 0.0
        %375 = vmatprep.subr.mxu0 0.0
        %376 = vmatpush1.msra.mxu0 0.0
        %377 = vmatprep.subr.mxu0 0.0
        %378 = vmatpush1.msra.mxu0 0.0
        %379 = vmatprep.subr.mxu0 0.0
        %380 = vmatpush1.msra.mxu0 0.0
        %381 = vmatprep.subr.mxu0 0.0
        %382 = vmatpush1.msra.mxu0 0.0
        %383 = vmatprep.subr.mxu0 0.0
        %384 = vmatpush1.msra.mxu0 0.0
        %385 = vmatprep.subr.mxu0 0.0
        %386 = vmatpush1.msra.mxu0 0.0
        %387 = vmatprep.subr.mxu0 0.0
        %388 = vmatpush1.msra.mxu0 0.0
        %389 = vmatprep.subr.mxu0 0.0
        %390 = vmatpush1.msra.mxu0 0.0
        %391 = vmatprep.subr.mxu0 0.0
        %392 = vmatpush1.msra.mxu0 0.0
        %393 = vmatprep.subr.mxu0 0.0
        %394 = vmatpush1.msra.mxu0 0.0
        %395 = vmatprep.subr.mxu0 0.0
        %396 = vmatpush1.msra.mxu0 0.0
        %397 = vmatprep.subr.mxu0 0.0
        %398 = vmatpush1.msra.mxu0 0.0
        %399 = vmatprep.subr.mxu0 0.0
        %400 = vmatpush1.msra.mxu0 0.0
        %401 = vmatprep.subr.mxu0 0.0
        %402 = vmatpush1.msra.mxu0 0.0
        %403 = vmatprep.subr.mxu0 0.0
        %404 = vmatpush1.msra.mxu0 0.0
        %405 = vmatprep.subr.mxu0 0.0
        %406 = vmatpush1.msra.mxu0 0.0
        %407 = vmatprep.subr.mxu0 0.0
        %408 = vmatpush1.msra.mxu0 0.0
        %409 = vmatprep.subr.mxu0 0.0
        %410 = vmatpush1.msra.mxu0 0.0
        %411 = vmatprep.subr.mxu0 0.0
        %412 = vmatpush1.msra.mxu0 0.0
        %413 = vmatprep.subr.mxu0 0.0
        %414 = vmatpush1.msra.mxu0 0.0
        %415 = vmatprep.subr.mxu0 0.0
        %416 = vmatpush1.msra.mxu0 0.0
        %417 = vmatprep.subr.mxu0 0.0
        %418 = vmatpush1.msra.mxu0 0.0
        %419 = vmatprep.subr.mxu0 0.0
        %420 = vmatpush1.msra.mxu0 0.0
        %421 = vmatprep.subr.mxu0 0.0
        %422 = vmatpush1.msra.mxu0 0.0
        %423 = vmatprep.subr.mxu0 0.0
        %424 = vmatpush1.msra.mxu0 0.0
        %425 = vmatprep.subr.mxu0 0.0
        %426 = vmatpush1.msra.mxu0 0.0
        %427 = vmatprep.subr.mxu0 0.0
        %428 = vmatpush1.msra.mxu0 0.0
        %429 = vmatprep.subr.mxu0 0.0
        %430 = vmatpush1.msra.mxu0 0.0
        %431 = vmatprep.subr.mxu0 0.0
        %432 = vmatpush1.msra.mxu0 0.0
        %433 = vmatprep.subr.mxu0 0.0
        %434 = vmatpush1.msra.mxu0 0.0
        %435 = vmatprep.mubr.f32.mxu0 0.0
        %436 = vmatmul.mubr.f32.gmra.mrb[0].mxu0 %v356
        %v437 = vpop.f32.mrb[0].mxu0
        %v438 = vadd.f32 %v350, %v437
        %v439 = vpop.f32.mrb[0].mxu0
        %440 = vmatprep.mubr.f32.mxu0 0.0
        %441 = vmatmul.mubr.f32.gmra.mrb[0].mxu0 %v359
        %v442 = vpop.f32.mrb[0].mxu0
        %v443 = vadd.f32 %v351, %v442
        %v444 = vpop.f32.mrb[0].mxu0
        %445 = vmatprep.mubr.f32.mxu0 0.0
        %446 = vmatmul.mubr.f32.gmra.mrb[0].mxu0 %v362
        %v447 = vpop.f32.mrb[0].mxu0
        %v448 = vadd.f32 %v352, %v447
        %v449 = vpop.f32.mrb[0].mxu0
        %450 = vmatprep.mubr.f32.mxu0 0.0
        %451 = vmatmul.mubr.f32.gmra.mrb[0].mxu0 %v365
        %v452 = vpop.f32.mrb[0].mxu0
        %v453 = vadd.f32 %v353, %v452
        %v454 = vpop.f32.mrb[0].mxu0
        %455 = vdwg.mxu0
        %v456 = vsub.f32 0.0, %v438
        %v457 = vsub.f32 0.0, %v443
        %v458 = vsub.f32 0.0, %v448
        %v459 = vsub.f32 0.0, %v453
        %v460 = vmul.f32 %v456, 1.442695
        %v461 = vpow.pop %v460
        %v462 = vmul.f32 %v457, 1.442695
        %v463 = vpow.pop %v462
        %v464 = vmul.f32 %v458, 1.442695
        %v465 = vpow.pop %v464
        %v466 = vmul.f32 %v459, 1.442695
        %v467 = vpow.pop %v466
        %v468 = vadd.f32 %v461, 1.0
        %v469 = vadd.f32 %v463, 1.0
        %v470 = vadd.f32 %v465, 1.0
        %v471 = vadd.f32 %v467, 1.0
        %v472 = vrcp.pop %v468
        %v473 = vmul.f32 1.0, %v472
        %v474 = vrcp.pop %v469
        %v475 = vmul.f32 1.0, %v474
        %v476 = vrcp.pop %v470
        %v477 = vmul.f32 1.0, %v476
        %v478 = vrcp.pop %v471
        %v479 = vmul.f32 1.0, %v478
        %481 = vset.pattern.permute.xlu0 0
        %482 = vperm.xlu0 %481, %v473
        %v483 = vpop.permute.xlu0 %482
        %486 = vset.pattern.permute.xlu0 0
        %487 = vperm.xlu0 %486, %v475
        %v488 = vpop.permute.xlu0 %487
        %491 = vset.pattern.permute.xlu0 0
        %492 = vperm.xlu0 %491, %v477
        %v493 = vpop.permute.xlu0 %492
        %496 = vset.pattern.permute.xlu0 0
        %497 = vperm.xlu0 %496, %v479
        %v498 = vpop.permute.xlu0 %497
        %v500 = vmul.f32 %v243, %v483
        %v501 = vmul.f32 %v244, %v483
        %v502 = vmul.f32 %v245, %v488
        %v503 = vmul.f32 %v246, %v488
        %v504 = vmul.f32 %v247, %v493
        %v505 = vmul.f32 %v248, %v493
        %v506 = vmul.f32 %v249, %v498
        %v507 = vmul.f32 %v250, %v498
        %508 = vst [vmem:[%s242] sm:$0xff] %v500
        %509 = vst [vmem:[%s242 + $0x8] sm:$0xff] %v501
        %510 = vst [vmem:[%s242 + $0x10] sm:$0xff] %v502
        %511 = vst [vmem:[%s242 + $0x18] sm:$0xff] %v503
        %512 = vst [vmem:[%s242 + $0x20] sm:$0xff] %v504
        %513 = vst [vmem:[%s242 + $0x28] sm:$0xff] %v505
        %514 = vst [vmem:[%s242 + $0x30] sm:$0xff] %v506
        %515 = vst [vmem:[%s242 + $0x38] sm:$0xff] %v507
        %s516 = sand.u32 %s140, 1
        %s517 = scalar_lea.sflag [#allocation4], %s516
        %s518 = sand.u32 %s140, 1
        %s519 = smul.addr %s518, 64
        %s520 = scalar_lea.vmem [#allocation5], %s519
        // Predicated region
        $region45: #{tpu_custom_call.1} parent=39 // pred_check
          %p521 = pneg %p150
        $region46: #{tpu_custom_call.1} parent=39 // pred_check_branch
          %523 = sbr.rel (%p521) target = $region48
        $region47: #{tpu_custom_call.1} parent=39 // pred_region
          %s525 = ssub.s32 1024, 1024
          %526 = vsyncadd %s517, %s525
          %s527 = smul.addr %s22, 8
          %s528 = smul.addr %s527, 128
          %s529 = scalar_lea.hbm %s5, %s528
          %s530 = sshll.u32 %s520, 4
          %s531 = int_to_ptr.vmem [resolvable:$true] %s530
          %536 = dma.vmem_to_hbm [thread:$0]  %s531, 1024, %s529, %s517, 256, 256, 16
        $region48: #{tpu_custom_call.1} parent=39 // pred_fallthru
          _
      $region40: #{tpu_custom_call.1} parent=5 // pred_fallthru
        _
      %p537 = scmp.le.s32.totalorder 2, %s17
      // Predicated region
      $region49: #{tpu_custom_call.1} parent=5 // pred_check
        %p538 = pneg %p537
      $region50: #{tpu_custom_call.1} parent=5 // pred_check_branch
        %540 = sbr.rel (%p538) target = $region52
      $region51: #{tpu_custom_call.1} parent=5 // pred_region
        %s541 = ssub.s32 %s17, 2
        // Predicated region
        $region53: #{tpu_custom_call.1} parent=51 // pred_check
          %p542 = pneg %p156
        $region54: #{tpu_custom_call.1} parent=51 // pred_check_branch
          %544 = sbr.rel (%p542) target = $region56
        $region55: #{tpu_custom_call.1} parent=51 // pred_region
          %s545 = sand.u32 %s141, 1
          %s546 = scalar_lea.sflag [#allocation4], %s545
          %s547 = sand.u32 %s141, 1
          %s548 = smul.addr %s547, 64
          %s549 = scalar_lea.vmem [#allocation5], %s548
          %550 = dma.done %s546, 1024
        $region56: #{tpu_custom_call.1} parent=51 // pred_fallthru
          _
      $region52: #{tpu_custom_call.1} parent=5 // pred_fallthru
        _
    $region6: #{tpu_custom_call.1} parent=1 // loop_footer
      %s21 = sadd.s32 1, %s17
    $region7: #{tpu_custom_call.1} parent=1 // loop_footer_branch
      %16 = sbr.rel target = $region3
    $region8: #{tpu_custom_call.1} parent=1 // loop_exit
      _
    %551 = vsyncpa [#allocation3], 1
    %s552 = scalar_lea.sflag [#allocation3], 1
    %553 = vsyncpa %s552, 1
    %554 = vsyncpa [#allocation4], 1
    %s555 = scalar_lea.sflag [#allocation4], 1
    %556 = vsyncpa %s555, 1

</llo_original>
